<compile_context>
chip_gen: v7x
topology: tpu7x:2x2x1
jax: 0.10.0
libtpu: 0.0.40
codegen_flags: <defaults>
</compile_context>

<pallas_src>
import jax
import jax.numpy as jnp
from jax.experimental import pallas as pl
from jax.experimental.pallas import tpu as pltpu

_LANE = 128
_MIB = 1024 * 1024


def _tanh3_kernel(x_ref, o_ref):
    # Elementwise: tanh -> EUP slot, *3 -> VALU slot; DMA is the binding
    # resource, so compute rides for free under the stream.
    o_ref[...] = jnp.tanh(x_ref[...]) * 3.0


def _vmem_capacity_bytes() -> int:
    try:
        return int(pltpu.get_tpu_info().vmem_capacity_bytes)
    except Exception:
        return 64 * _MIB  # conservative fallback: v7x per-TC VMEM


def tanh3(x: jax.Array, *, target_block_bytes: int | None = None,
          donate_input: bool = False) -> jax.Array:
    """tanh(x) * 3 elementwise via a Pallas TPU kernel.

    `donate_input=True` only helps if the caller actually donates `x` at the
    jax.jit boundary (donate_argnums); otherwise XLA inserts a defensive copy.
    """
    orig_shape = x.shape
    if not jnp.issubdtype(x.dtype, jnp.floating):
        # tanh is a float op; promote integer/bool inputs explicitly.
        x = x.astype(jnp.float32)
    dtype = x.dtype
    itemsize = jnp.dtype(dtype).itemsize

    n = x.size
    if n == 0:
        return jnp.zeros(orig_shape, dtype)

    x_flat = x.reshape(-1)

    # Lane-aligned head handled by the kernel; tiny tail (< 128 elems, rare
    # for activation tensors) handled with plain jnp — no pad/slice passes.
    n_main = (n // _LANE) * _LANE
    if n_main == 0:
        return (jnp.tanh(x_flat) * 3.0).reshape(orig_shape)

    # Pick the widest lane-dense width (multiple of 128) that divides n_main
    # so the reshape is a free bitcast and stores are long unmasked vst runs.
    width = _LANE
    for w in (8 * _LANE, 4 * _LANE, 2 * _LANE, _LANE):
        if n_main % w == 0:
            width = w
            break
    rows = n_main // width

    # Generation-aware block / VMEM budget.
    phys_vmem = _vmem_capacity_bytes()
    if phys_vmem >= 96 * _MIB:      # v5e / v6e: 128 MiB physical VMEM
        vmem_cap = 80 * _MIB
    else:                            # v7x: 64 MiB physical per TensorCore
        vmem_cap = 44 * _MIB
    if target_block_bytes is None:
        target_block_bytes = 8 * _MIB
    # Keep 6 * block (2x double-buffered in + out, plus headroom) under budget.
    target_block_bytes = min(target_block_bytes, vmem_cap // 6)

    tile_rows = max(1, target_block_bytes // (width * itemsize))
    tile_rows = min(tile_rows, rows)
    if tile_rows != rows:
        # Align interior blocks to the packed-sublane granule: 32 rows covers
        # f32 (8), bf16/f16 (16) and int8/fp8 (32) packing.
        if tile_rows >= 32:
            tile_rows = (tile_rows // 32) * 32
        elif tile_rows >= 8:
            tile_rows = (tile_rows // 8) * 8
    block_bytes = tile_rows * width * itemsize

    grid = (pl.cdiv(rows, tile_rows),)  # partial edge block: writeback is masked
    vmem_limit = int(min(vmem_cap, max(32 * _MIB, 6 * block_bytes)))

    cost = pl.CostEstimate(
        flops=n_main,
        transcendentals=n_main,
        bytes_accessed=2 * n_main * itemsize,
    )

    x2d = x_flat[:n_main].reshape(rows, width)

    out2d = pl.pallas_call(
        _tanh3_kernel,
        out_shape=jax.ShapeDtypeStruct((rows, width), dtype),
        grid_spec=pltpu.PrefetchScalarGridSpec(
            num_scalar_prefetch=0,
            grid=grid,
            in_specs=[pl.BlockSpec((tile_rows, width), lambda i: (i, 0))],
            out_specs=pl.BlockSpec((tile_rows, width), lambda i: (i, 0)),
        ),
        compiler_params=pltpu.CompilerParams(
            dimension_semantics=("parallel",),
            vmem_limit_bytes=vmem_limit,
        ),
        cost_estimate=cost,
        input_output_aliases=({0: 0} if donate_input else {}),
    )(x2d)

    if n_main == n:
        return out2d.reshape(orig_shape)

    tail = jnp.tanh(x_flat[n_main:]) * 3.0
    return jnp.concatenate([out2d.reshape(-1), tail]).reshape(orig_shape)


if __name__ == "__main__":
    key = jax.random.PRNGKey(0)

    # Shape consistent with a conv-style NCHW activation input.
    x = jax.random.normal(key, (2, 4, 16, 16), dtype=jnp.float32)
    y = tanh3(x)
    jax.block_until_ready(y)
    y_ref = jnp.tanh(x) * 3.0
    assert y.shape == x.shape and y.dtype == x.dtype
    assert jnp.allclose(y, y_ref, atol=1e-5, rtol=1e-5)

    # Ragged size > 128: exercises the kernel-head + jnp-tail path.
    x2 = jax.random.normal(jax.random.PRNGKey(1), (3, 50), dtype=jnp.float32)
    y2 = tanh3(x2)
    jax.block_until_ready(y2)
    assert jnp.allclose(y2, jnp.tanh(x2) * 3.0, atol=1e-5, rtol=1e-5)

    # Tiny ragged size < 128: pure-jnp fallback path.
    x3 = jax.random.normal(jax.random.PRNGKey(2), (3, 5, 7), dtype=jnp.float32)
    y3 = tanh3(x3)
    jax.block_until_ready(y3)
    assert jnp.allclose(y3, jnp.tanh(x3) * 3.0, atol=1e-5, rtol=1e-5)

    # bf16 path (packed-sublane alignment relevant for larger inputs).
    x4 = jax.random.normal(jax.random.PRNGKey(3), (2, 4, 16, 16),
                           dtype=jnp.bfloat16)
    y4 = tanh3(x4)
    jax.block_until_ready(y4)
    assert y4.dtype == jnp.bfloat16
    assert jnp.allclose(y4.astype(jnp.float32),
                        jnp.tanh(x4.astype(jnp.float32)) * 3.0,
                        atol=3e-2, rtol=3e-2)

    print("KERNEL_OK")
</pallas_src>

<mosaic_0001>
module attributes {stable_mosaic.version = 11 : i64} {
  func.func @_tanh3_kernel(%arg0: i32, %arg1: memref<2x1024xf32, #tpu.memory_space<vmem>>, %arg2: memref<2x1024xf32, #tpu.memory_space<vmem>>) attributes {dimension_semantics = [#tpu.dimension_semantics<parallel>], iteration_bounds = array<i64: 1>, scalar_prefetch = 0 : i64, scratch_operands = 0 : i64, tpu.core_type = #tpu.core_type<tc>, window_params = [{transform_indices = @transform_0, window_bounds = array<i64: 2, 1024>}, {transform_indices = @transform_1, window_bounds = array<i64: 2, 1024>}]} {
    %c0 = arith.constant 0 : index
    %c0_0 = arith.constant 0 : index
    %0 = vector.load %arg1[%c0, %c0_0] : memref<2x1024xf32, #tpu.memory_space<vmem>>, vector<2x1024xf32>
    %1 = math.tanh %0 : vector<2x1024xf32>
    %cst = arith.constant 3.000000e+00 : f32
    %2 = vector.broadcast %cst : f32 to vector<2x1024xf32>
    %3 = arith.mulf %1, %2 : vector<2x1024xf32>
    %c0_1 = arith.constant 0 : index
    %c0_2 = arith.constant 0 : index
    %4 = vector.load %arg2[%c0_1, %c0_2] : memref<2x1024xf32, #tpu.memory_space<vmem>>, vector<2x1024xf32>
    tpu.vector_store %arg2[%c0_1, %c0_2], %3 {strides = array<i32>} : memref<2x1024xf32, #tpu.memory_space<vmem>>, vector<2x1024xf32>,
    return
  }
  func.func @transform_0(%arg0: i32) -> (i32, i32) {
    %c0_i32 = arith.constant 0 : i32
    %c0_i32_0 = arith.constant 0 : i32
    return %arg0, %c0_i32 : i32, i32
  }
  func.func @transform_1(%arg0: i32) -> (i32, i32) {
    %c0_i32 = arith.constant 0 : i32
    %c0_i32_0 = arith.constant 0 : i32
    return %arg0, %c0_i32 : i32, i32
  }
}

</mosaic_0001>

<llo_original>
// kernel: tpu_custom_call.1
$region0: #{tpu_custom_call.1}
  #allocation0 [shape = 'u32[]', space=smem, size = 0x4, offset = 0x4, fixed_abs, tag = 'smem constant byte address 0x4 - core index']
  #allocation1 [shape = 'u32[144,128]{1,0:T(1,128)}', space=vmem, size = 0x12000, scoped, tag = 'internal scratch']
  %s0 = inlined_call_operand.hbm [shape: f32[2,1024], index: 0, kind: input, shape index: {}]
  %s1 = inlined_call_operand.hbm [shape: f32[2,1024], index: 1, kind: output, shape index: {}]
  %s2 = sld [smem:[#allocation0]]
  $region18: #{tpu_custom_call.1} parent=0
    _
  %s4 = ssub.s32 1, %s2
  %s5 = scalar_select 0, %s4, %s2
  $region1: #{tpu_custom_call.1} parent=0
    #allocation2 [shape = 'u8[8192]{0}', space=vmem, size = 0x2000, scoped, tag = 'input window, operand 0, single buffered']
    #allocation3 [shape = 's32[1]{0}', space=sflag, size = 0x4, scoped, tag = 'scoped memory for tpu_custom_call.1']
    #allocation4 [shape = 's32[1]{0}', space=sflag, size = 0x4, scoped, tag = 'scoped memory for tpu_custom_call.1']
    #allocation5 [shape = 'u8[8192]{0}', space=vmem, size = 0x2000, scoped, tag = 'output window, operand 0, single buffered']
    %6 = vsyncpa [#allocation3], 0
    %7 = vsyncpa [#allocation4], 0
    // Predicated region
    $region2: #{tpu_custom_call.1} parent=1 // pred_check
      _
    $region3: #{tpu_custom_call.1} parent=1 // pred_check_branch
      %9 = sbr.rel (0) target = $region5
    $region4: #{tpu_custom_call.1} parent=1 // pred_region
      %s11 = ssub.s32 256, 256
      %12 = vsyncadd [#allocation3], %s11
      %s14 = sshll.u32 [#allocation2], 4
      %s15 = int_to_ptr.vmem [resolvable:$true] %s14
      %17 = dma.hbm_to_vmem [thread:$0]  %s0, 256, %s15, [#allocation3]
    $region5: #{tpu_custom_call.1} parent=1 // pred_fallthru
      _
    // Predicated region
    $region6: #{tpu_custom_call.1} parent=1 // pred_check
      _
    $region7: #{tpu_custom_call.1} parent=1 // pred_check_branch
      %19 = sbr.rel (0) target = $region9
    $region8: #{tpu_custom_call.1} parent=1 // pred_region
      %20 = dma.done [#allocation3], 256
    $region9: #{tpu_custom_call.1} parent=1 // pred_fallthru
      _
    %v21 = vld [vmem:[#allocation2] sm:$0xff]
    %v22 = vld [vmem:[#allocation2 + $0x8] sm:$0xff]
    %v23 = vtanh.pop %v21
    %v24 = vtanh.pop %v22
    %v25 = vmul.f32 %v23, 3.0
    %v26 = vmul.f32 %v24, 3.0
    %27 = vst [vmem:[#allocation5] sm:$0xff] %v25
    %28 = vst [vmem:[#allocation5 + $0x8] sm:$0xff] %v26
    // Predicated region
    $region10: #{tpu_custom_call.1} parent=1 // pred_check
      _
    $region11: #{tpu_custom_call.1} parent=1 // pred_check_branch
      %30 = sbr.rel (0) target = $region13
    $region12: #{tpu_custom_call.1} parent=1 // pred_region
      %s32 = ssub.s32 256, 256
      %33 = vsyncadd [#allocation4], %s32
      %s35 = sshll.u32 [#allocation5], 4
      %s36 = int_to_ptr.vmem [resolvable:$true] %s35
      %38 = dma.vmem_to_hbm [thread:$0]  %s36, 256, %s1, [#allocation4]
    $region13: #{tpu_custom_call.1} parent=1 // pred_fallthru
      _
    // Predicated region
    $region14: #{tpu_custom_call.1} parent=1 // pred_check
      _
    $region15: #{tpu_custom_call.1} parent=1 // pred_check_branch
      %40 = sbr.rel (0) target = $region17
    $region16: #{tpu_custom_call.1} parent=1 // pred_region
      %41 = dma.done [#allocation4], 256
    $region17: #{tpu_custom_call.1} parent=1 // pred_fallthru
      _
    %42 = vsyncpa [#allocation3], 1
    %43 = vsyncpa [#allocation4], 1

</llo_original>
